<compile_context>
chip_gen: v6e
topology: v6e:2x2x1
jax: 0.10.0
libtpu: 0.0.40
codegen_flags: <defaults>
</compile_context>

<pallas_src>
import jax
import jax.numpy as jnp
from jax.experimental import pallas as pl
from jax.experimental.pallas import tpu as pltpu

IN_FEATURES = 100
OUT_FEATURES = 100
INP = 128    # padded contraction dim (zero rows in the padded weight keep it exact)
OUTP = 128   # padded internal output dim (sliced to 100 lanes before the store)


def _linear_sub5_kernel(x_ref, w_ref, b_ref, o_ref):
    # x_ref: (B, INP), w_ref: (INP, OUTP), b_ref: (1, OUTP), o_ref: (B, OUT_FEATURES)
    acc = jnp.dot(x_ref[...], w_ref[...], preferred_element_type=jnp.float32)
    out = acc + b_ref[...]
    o_ref[...] = out[:, :OUT_FEATURES].astype(o_ref.dtype)


def init_params(key, dtype=jnp.float32):
    """torch.nn.Linear(100, 100)-style init, returned both raw and kernel-ready.

    The padded layouts (and the -5 fold into the bias) are computed ONCE here,
    not on every forward call.
    """
    kw, kb = jax.random.split(key)
    bound = 1.0 / (IN_FEATURES ** 0.5)
    # w stored as (IN, OUT) == torch weight.T so the kernel computes x @ W + b.
    w = jax.random.uniform(kw, (IN_FEATURES, OUT_FEATURES), dtype=dtype,
                           minval=-bound, maxval=bound)
    b = jax.random.uniform(kb, (OUT_FEATURES,), dtype=dtype,
                           minval=-bound, maxval=bound)
    w_p = jnp.zeros((INP, OUTP), dtype).at[:IN_FEATURES, :OUT_FEATURES].set(w)
    b_p = jnp.zeros((1, OUTP), dtype).at[0, :OUT_FEATURES].set(b - 5.0)
    return w, b, w_p, b_p


def linear_sub5(x, w_p, b_p):
    """Computes x @ W + b - 5.0 (the -5 is already folded into b_p).

    x:   (B, 100) float32
    w_p: (128, 128) float32  pre-padded weight (zero K rows / zero OUT cols)
    b_p: (1, 128)  float32  pre-padded (bias - 5)
    """
    B = x.shape[0]
    # Only per-call prep: zero-extend x's K dim to 128 lanes. Padded K columns hit
    # zero rows of w_p, so the contraction stays exact. allow_input_fusion lets XLA
    # fuse this pad into the custom-call input instead of an HBM round-trip.
    x_p = jnp.pad(x, ((0, 0), (0, INP - IN_FEATURES)))

    flops = 2 * B * INP * OUTP
    bytes_accessed = (B * INP + INP * OUTP + OUTP + B * OUT_FEATURES) * 4

    return pl.pallas_call(
        _linear_sub5_kernel,
        out_shape=jax.ShapeDtypeStruct((B, OUT_FEATURES), x.dtype),
        in_specs=[
            pl.BlockSpec(memory_space=pltpu.MemorySpace.VMEM),
            pl.BlockSpec(memory_space=pltpu.MemorySpace.VMEM),
            pl.BlockSpec(memory_space=pltpu.MemorySpace.VMEM),
        ],
        out_specs=pl.BlockSpec(memory_space=pltpu.MemorySpace.VMEM),
        compiler_params=pltpu.CompilerParams(
            allow_input_fusion=[True, False, False]),
        cost_estimate=pl.CostEstimate(
            flops=flops, bytes_accessed=bytes_accessed, transcendentals=0),
    )(x_p, w_p, b_p)


if __name__ == "__main__":
    key = jax.random.PRNGKey(0)
    kx, kp = jax.random.split(key)

    B = 8
    x = jax.random.normal(kx, (B, IN_FEATURES), dtype=jnp.float32)
    w, b, w_p, b_p = init_params(kp)   # padded params built once, outside the call path

    fwd = jax.jit(linear_sub5)
    out = jax.block_until_ready(fwd(x, w_p, b_p))

    # Reference of the PyTorch module semantics: Linear(100,100)(x) - 5.
    ref = x @ w + b - 5.0
    assert out.shape == (B, OUT_FEATURES), f"bad shape {out.shape}"
    assert jnp.allclose(out, ref, atol=1e-5, rtol=1e-5), "mismatch vs reference"

    print("KERNEL_OK")
</pallas_src>

<mosaic_0001>
module attributes {stable_mosaic.version = 11 : i64} {
  func.func @_linear_sub5_kernel(%arg0: memref<8x128xf32, #tpu.memory_space<vmem>>, %arg1: memref<128x128xf32, #tpu.memory_space<vmem>>, %arg2: memref<1x128xf32, #tpu.memory_space<vmem>>, %arg3: memref<8x100xf32, #tpu.memory_space<vmem>>) attributes {dimension_semantics = [], scalar_prefetch = 0 : i64, scratch_operands = 0 : i64, tpu.core_type = #tpu.core_type<tc>} {
    %c0 = arith.constant 0 : index
    %c0_0 = arith.constant 0 : index
    %0 = vector.load %arg0[%c0, %c0_0] : memref<8x128xf32, #tpu.memory_space<vmem>>, vector<8x128xf32>
    %c0_1 = arith.constant 0 : index
    %c0_2 = arith.constant 0 : index
    %1 = vector.load %arg1[%c0_1, %c0_2] : memref<128x128xf32, #tpu.memory_space<vmem>>, vector<128x128xf32>
    %cst = arith.constant dense<0.000000e+00> : vector<8x128xf32>
    %2 = tpu.matmul %0, %1, %cst {dimension_numbers = #tpu.dot_dimension_numbers<[1], [0], [0], [1], [0, 0, 1, 1], [], []>} : vector<8x128xf32>, vector<128x128xf32>, vector<8x128xf32> -> vector<8x128xf32>
    %c0_3 = arith.constant 0 : index
    %c0_4 = arith.constant 0 : index
    %3 = vector.load %arg2[%c0_3, %c0_4] : memref<1x128xf32, #tpu.memory_space<vmem>>, vector<1x128xf32>
    %4 = vector.broadcast %3 : vector<1x128xf32> to vector<8x128xf32>
    %5 = arith.addf %2, %4 : vector<8x128xf32>
    %6 = vector.extract_strided_slice %5 {offsets = [0, 0], sizes = [8, 100], strides = [1, 1]} : vector<8x128xf32> to vector<8x100xf32>
    %c0_5 = arith.constant 0 : index
    %c0_6 = arith.constant 0 : index
    %7 = vector.load %arg3[%c0_5, %c0_6] : memref<8x100xf32, #tpu.memory_space<vmem>>, vector<8x100xf32>
    tpu.vector_store %arg3[%c0_5, %c0_6], %6 {strides = array<i32>} : memref<8x100xf32, #tpu.memory_space<vmem>>, vector<8x100xf32>,
    return
  }
}

</mosaic_0001>

<llo_original>
// kernel: linear_sub5.2
$region0: #{linear_sub5.2}
  #allocation0 [shape = 'u32[]', space=smem, size = 0x4, offset = 0x4, fixed_abs, tag = 'smem constant byte address 0x4 - core index']
  #allocation1 [shape = 'u32[144,128]{1,0:T(1,128)}', space=vmem, size = 0x12000, scoped, tag = 'internal scratch']
  #allocation2 [shape = 'u32[2048]{0}', space=vmem, size = 0x2000, scoped, tag = 'scoped memory for linear_sub5.2']
  #allocation3 [shape = 'u32[2048]{0}', space=vmem, size = 0x2000, scoped, tag = 'scoped memory for linear_sub5.2']
  #allocation4 [shape = 'u32[2048]{0}', space=vmem, size = 0x2000, scoped, tag = 'scoped memory for linear_sub5.2']
  #allocation5 [shape = 'u32[2048]{0}', space=vmem, size = 0x2000, scoped, tag = 'scoped memory for linear_sub5.2']
  #allocation6 [shape = 'u32[2048]{0}', space=vmem, size = 0x2000, scoped, tag = 'scoped memory for linear_sub5.2']
  %s0 = inlined_call_operand.hbm [shape: f32[128,128], index: 0, kind: input, shape index: {}]
  %s1 = inlined_call_operand.vmem [shape: f32[1,128], index: 1, kind: input, shape index: {}]
  %s2 = inlined_call_operand.hbm [shape: f32[8,100], index: 2, kind: input, shape index: {}]
  %s3 = inlined_call_operand.<no memory space> [shape: f32[], index: 3, kind: input, shape index: {}]
  %s4 = inlined_call_operand.hbm [shape: f32[8,100], index: 4, kind: output, shape index: {}]
  %s5 = sld [smem:[#allocation0]]
  $region30: #{linear_sub5.2} parent=0
    _
  %s7 = ssub.s32 1, %s5
  %s8 = scalar_select 0, %s7, %s5
  %v9 = vstv %s3
  $region1: #{linear_sub5.2} parent=0
    #allocation7 [shape = 'u8[4096]{0}', space=vmem, size = 0x1000, scoped, tag = 'operand span for operand 2']
    #allocation8 [shape = 's32[1]{0}', space=sflag, size = 0x4, scoped, tag = 'scoped memory for linear_sub5.2']
    #allocation9 [shape = 's32[1]{0}', space=sflag, size = 0x4, scoped, tag = 'scoped memory for linear_sub5.2']
    #allocation10 [shape = 'u8[65536]{0}', space=vmem, size = 0x10000, scoped, tag = 'input window, operand 1, single buffered']
    #allocation11 [shape = 's32[1]{0}', space=sflag, size = 0x4, scoped, tag = 'scoped memory for linear_sub5.2']
    #allocation12 [shape = 'u8[4096]{0}', space=vmem, size = 0x1000, scoped, tag = 'output window, operand 0, single buffered']
    #allocation13 [shape = 'u8[4096]{0}', space=vmem, size = 0x1000, dematerialized = true, scoped, tag = 'FusionAdapter Buffer %fusion.1 = f32[8,128]{1,0:T(8,128)} fusion(%param_2.1, %param_3), kind=kLoop, calls=%fused_computation.1.clone, metadata={op_name="jit(linear_sub5)/jit(_pad)/pad" stack_frame_id=1}']
    %10 = vsyncpa [#allocation8], 0
    %11 = vsyncpa [#allocation11], 0
    %12 = vsyncpa [#allocation9], 0
    // Predicated region
    $region2: #{linear_sub5.2} parent=1 // pred_check
      _
    $region3: #{linear_sub5.2} parent=1 // pred_check_branch
      %14 = sbr.rel (0) target = $region5
    $region4: #{linear_sub5.2} parent=1 // pred_region
      %s16 = ssub.s32 128, 128
      %17 = vsyncadd [#allocation8], %s16
      %s19 = sshll.u32 [#allocation7], 4
      %s20 = int_to_ptr.vmem [resolvable:$true] %s19
      %22 = dma.hbm_to_vmem [thread:$0]  %s2, 128, %s20, [#allocation8]
    $region5: #{linear_sub5.2} parent=1 // pred_fallthru
      _
    // Predicated region
    $region6: #{linear_sub5.2} parent=1 // pred_check
      _
    $region7: #{linear_sub5.2} parent=1 // pred_check_branch
      %24 = sbr.rel (0) target = $region9
    $region8: #{linear_sub5.2} parent=1 // pred_region
      %s26 = ssub.s32 2048, 2048
      %27 = vsyncadd [#allocation11], %s26
      %s28 = sshll.u32 [#allocation10], 4
      %s29 = int_to_ptr.vmem [resolvable:$true] %s28
      %34 = dma.hbm_to_vmem [thread:$0]  %s0, 2048, %s29, [#allocation11], 128, 128, 8
    $region9: #{linear_sub5.2} parent=1 // pred_fallthru
      _
    // Predicated region
    $region10: #{linear_sub5.2} parent=1 // pred_check
      _
    $region11: #{linear_sub5.2} parent=1 // pred_check_branch
      %36 = sbr.rel (0) target = $region13
    $region12: #{linear_sub5.2} parent=1 // pred_region
      _
    $region13: #{linear_sub5.2} parent=1 // pred_fallthru
      _
    // Predicated region
    $region14: #{linear_sub5.2} parent=1 // pred_check
      _
    $region15: #{linear_sub5.2} parent=1 // pred_check_branch
      %38 = sbr.rel (0) target = $region17
    $region16: #{linear_sub5.2} parent=1 // pred_region
      %39 = dma.done [#allocation8], 128
    $region17: #{linear_sub5.2} parent=1 // pred_fallthru
      _
    // Predicated region
    $region18: #{linear_sub5.2} parent=1 // pred_check
      _
    $region19: #{linear_sub5.2} parent=1 // pred_check_branch
      %41 = sbr.rel (0) target = $region21
    $region20: #{linear_sub5.2} parent=1 // pred_region
      %42 = dma.done [#allocation11], 2048
    $region21: #{linear_sub5.2} parent=1 // pred_fallthru
      _
    %v43 = vld [vmem:[#allocation7] sm:$0xff]
    %v44 = vlaneseq
    %v45 = vand.u32 %v44, 127
    %vm47 = vcmp.lt.s32.totalorder %v45, 100
    %v48 = vsel %vm47, %v43, %v9
    %s50 = ssub.s32 256, 1
    %51 = vst [vmem:[#allocation13] sm:%s50] %v48
    %v52 = vld [vmem:[#allocation13] sm:$0xff]
    %v53 = vld [vmem:[#allocation10] sm:$0xff]
    %v54 = vld [vmem:[#allocation10 + $0x8] sm:$0xff]
    %v55 = vld [vmem:[#allocation10 + $0x10] sm:$0xff]
    %v56 = vld [vmem:[#allocation10 + $0x18] sm:$0xff]
    %v57 = vld [vmem:[#allocation10 + $0x20] sm:$0xff]
    %v58 = vld [vmem:[#allocation10 + $0x28] sm:$0xff]
    %v59 = vld [vmem:[#allocation10 + $0x30] sm:$0xff]
    %v60 = vld [vmem:[#allocation10 + $0x38] sm:$0xff]
    %v61 = vld [vmem:[#allocation10 + $0x40] sm:$0xff]
    %v62 = vld [vmem:[#allocation10 + $0x48] sm:$0xff]
    %v63 = vld [vmem:[#allocation10 + $0x50] sm:$0xff]
    %v64 = vld [vmem:[#allocation10 + $0x58] sm:$0xff]
    %v65 = vld [vmem:[#allocation10 + $0x60] sm:$0xff]
    %v66 = vld [vmem:[#allocation10 + $0x68] sm:$0xff]
    %v67 = vld [vmem:[#allocation10 + $0x70] sm:$0xff]
    %v68 = vld [vmem:[#allocation10 + $0x78] sm:$0xff]
    %v69 = vld [vmem:[%s1] sm:$0x1]
    %v71 = vlaneseq
    %v72 = vshrl.u32 %v71, 7
    %v73 = vsub.s32 0, %v72
    %v74 = vrot.slane %v69, %v73
    %76 = vmatprep.subr.mxu0 0.0
    %77 = vmatpush1.msra.mxu0 %v68
    %78 = vmatprep.subr.mxu0 0.0
    %79 = vmatpush1.msra.mxu0 %v67
    %80 = vmatprep.subr.mxu0 0.0
    %81 = vmatpush1.msra.mxu0 %v66
    %82 = vmatprep.subr.mxu0 0.0
    %83 = vmatpush1.msra.mxu0 %v65
    %84 = vmatprep.subr.mxu0 0.0
    %85 = vmatpush1.msra.mxu0 %v64
    %86 = vmatprep.subr.mxu0 0.0
    %87 = vmatpush1.msra.mxu0 %v63
    %88 = vmatprep.subr.mxu0 0.0
    %89 = vmatpush1.msra.mxu0 %v62
    %90 = vmatprep.subr.mxu0 0.0
    %91 = vmatpush1.msra.mxu0 %v61
    %92 = vmatprep.subr.mxu0 0.0
    %93 = vmatpush1.msra.mxu0 %v60
    %94 = vmatprep.subr.mxu0 0.0
    %95 = vmatpush1.msra.mxu0 %v59
    %96 = vmatprep.subr.mxu0 0.0
    %97 = vmatpush1.msra.mxu0 %v58
    %98 = vmatprep.subr.mxu0 0.0
    %99 = vmatpush1.msra.mxu0 %v57
    %100 = vmatprep.subr.mxu0 0.0
    %101 = vmatpush1.msra.mxu0 %v56
    %102 = vmatprep.subr.mxu0 0.0
    %103 = vmatpush1.msra.mxu0 %v55
    %104 = vmatprep.subr.mxu0 0.0
    %105 = vmatpush1.msra.mxu0 %v54
    %106 = vmatprep.subr.mxu0 0.0
    %107 = vmatpush1.msra.mxu0 %v53
    %108 = vmatprep.subr.mxu0 0.0
    %109 = vmatpush2.msra.mxu0 0.0
    %110 = vmatprep.subr.mxu0 0.0
    %111 = vmatpush2.msra.mxu0 0.0
    %112 = vmatprep.subr.mxu0 0.0
    %113 = vmatpush2.msra.mxu0 0.0
    %114 = vmatprep.subr.mxu0 0.0
    %115 = vmatpush2.msra.mxu0 0.0
    %116 = vmatprep.subr.mxu0 0.0
    %117 = vmatpush2.msra.mxu0 0.0
    %118 = vmatprep.subr.mxu0 0.0
    %119 = vmatpush2.msra.mxu0 0.0
    %120 = vmatprep.subr.mxu0 0.0
    %121 = vmatpush2.msra.mxu0 0.0
    %122 = vmatprep.subr.mxu0 0.0
    %123 = vmatpush2.msra.mxu0 0.0
    %124 = vmatprep.subr.mxu0 0.0
    %125 = vmatpush2.msra.mxu0 0.0
    %126 = vmatprep.subr.mxu0 0.0
    %127 = vmatpush2.msra.mxu0 0.0
    %128 = vmatprep.subr.mxu0 0.0
    %129 = vmatpush2.msra.mxu0 0.0
    %130 = vmatprep.subr.mxu0 0.0
    %131 = vmatpush2.msra.mxu0 0.0
    %132 = vmatprep.subr.mxu0 0.0
    %133 = vmatpush2.msra.mxu0 0.0
    %134 = vmatprep.subr.mxu0 0.0
    %135 = vmatpush2.msra.mxu0 0.0
    %136 = vmatprep.subr.mxu0 0.0
    %137 = vmatpush2.msra.mxu0 0.0
    %138 = vmatprep.subr.mxu0 0.0
    %139 = vmatpush2.msra.mxu0 0.0
    %140 = vmatprep.mubr.f32.mxu0 0.0
    %141 = vmatmul.mubr.f32.gmra.mxu0 %v52
    %v142 = vpop.f32.mrf.mxu0
    %v143 = vadd.f32 %v74, %v142
    %v144 = vpop.f32.mrf.mxu0
    %145 = vdwg.mxu0
    %vm146 = vcmask 818176
    %147 = vst.msk [vmem:[#allocation12] sm:$0xff] %vm146, %v143
    // Predicated region
    $region22: #{linear_sub5.2} parent=1 // pred_check
      _
    $region23: #{linear_sub5.2} parent=1 // pred_check_branch
      %149 = sbr.rel (0) target = $region25
    $region24: #{linear_sub5.2} parent=1 // pred_region
      %s151 = ssub.s32 128, 128
      %152 = vsyncadd [#allocation9], %s151
      %s154 = sshll.u32 [#allocation12], 4
      %s155 = int_to_ptr.vmem [resolvable:$true] %s154
      %157 = dma.vmem_to_hbm [thread:$0]  %s155, 128, %s4, [#allocation9]
    $region25: #{linear_sub5.2} parent=1 // pred_fallthru
      _
    // Predicated region
    $region26: #{linear_sub5.2} parent=1 // pred_check
      _
    $region27: #{linear_sub5.2} parent=1 // pred_check_branch
      %159 = sbr.rel (0) target = $region29
    $region28: #{linear_sub5.2} parent=1 // pred_region
      %160 = dma.done [#allocation9], 128
    $region29: #{linear_sub5.2} parent=1 // pred_fallthru
      _
    %161 = vsyncpa [#allocation8], 1
    %162 = vsyncpa [#allocation11], 1
    %163 = vsyncpa [#allocation9], 1

</llo_original>
